<compile_context>
chip_gen: v7x
topology: tpu7x:2x2x1
jax: 0.10.0
libtpu: 0.0.40
codegen_flags: <defaults>
</compile_context>

<pallas_src>
import jax
import jax.numpy as jnp
from jax.experimental import pallas as pl
from jax.experimental.pallas import tpu as pltpu

_LANE = 128
_SUBLANE = 8


def _round_up(x, m):
    return ((x + m - 1) // m) * m


def _sublane_pack(dtype):
    # (8,128) tile for 32-bit, (16,128) for bf16/fp16, (32,128) for int8/fp8.
    return max(_SUBLANE, 32 // jnp.dtype(dtype).itemsize)


def _vmem_capacity_bytes():
    try:
        return int(pltpu.get_tpu_info().vmem_capacity_bytes)
    except Exception:
        return 64 << 20  # conservative default = v7x per-TC VMEM


def _plan_tiles(M, K, N_pad, in_bytes, out_bytes, pack):
    """Pick (TM, TK, vmem_limit) from the hardware VMEM capacity."""
    vmem_cap = _vmem_capacity_bytes()
    budget = int(0.40 * vmem_cap)  # buffers for this kernel
    m_aligned = _round_up(M, pack)

    # --- K tiling: only when the (double-buffered) weight slab would blow the
    #     budget (very large hidden sizes).  TK must be a multiple of 128
    #     because it is the lane dim of the x tile.
    if 2 * K * N_pad * in_bytes <= budget // 2:
        TK = K
    else:
        tk = (budget // 2) // (2 * N_pad * in_bytes)
        TK = max(_LANE, (tk // _LANE) * _LANE)
        if TK >= K:
            TK = K

    # --- M tiling: fill the remaining budget with double-buffered x/out tiles
    #     plus the f32 accumulator scratch.
    resident = 2 * TK * N_pad * in_bytes + 2 * N_pad * in_bytes  # weight + bias
    per_row = 2 * TK * in_bytes + 2 * N_pad * out_bytes + N_pad * 4
    tm = max((budget - resident) // per_row, pack)
    tm = int(min(tm, 2048, m_aligned))
    tm = max(pack, (tm // pack) * pack)
    # Guarantee >= 2 M tiles (when M is big enough) so the "parallel" axis can
    # actually be split across the two TensorCores on v7x megacore.
    if m_aligned >= 2 * pack:
        tm = min(tm, _round_up((m_aligned + 1) // 2, pack))

    needed = (2 * TK * N_pad * in_bytes + 2 * N_pad * in_bytes
              + 2 * tm * TK * in_bytes + 2 * tm * N_pad * out_bytes
              + tm * N_pad * 4)
    vmem_limit = int(max(16 << 20,
                         min(needed + (8 << 20), int(0.65 * vmem_cap))))
    return tm, TK, vmem_limit


def enlabeler_head(last_hidden_state, weight, bias, *, out_dtype=None):
    """Enlabeler classification head.

    last_hidden_state: (B, S, in_dim)  -- pt_model(...)['last_hidden_state']
    weight:            (in_dim, out_dim)  == PyTorch nn.Linear.weight TRANSPOSED
    bias:              (out_dim,)
    out_dtype:         output dtype (default: input dtype); accumulation is f32.

    Returns (B*S, out_dim) -- same as Enlabeler.forward's `output`.
    """
    B, S, K = last_hidden_state.shape
    assert weight.ndim == 2 and weight.shape[0] == K, (
        "weight must be (in_dim, out_dim) = PyTorch nn.Linear.weight transposed")
    N = weight.shape[1]
    assert bias.shape == (N,)

    M = B * S
    in_dtype = last_hidden_state.dtype
    out_dtype = jnp.dtype(out_dtype) if out_dtype is not None else jnp.dtype(in_dtype)

    in_bytes = jnp.dtype(in_dtype).itemsize
    out_bytes = out_dtype.itemsize
    pack = max(_sublane_pack(in_dtype), _sublane_pack(out_dtype))

    # Lane-dense output: pad out_dim up to a multiple of 128 (skip if already dense).
    N_pad = _round_up(N, _LANE)

    TM, TK, vmem_limit = _plan_tiles(M, K, N_pad, in_bytes, out_bytes, pack)
    num_m = pl.cdiv(M, TM)            # ragged final M block: OOB rows masked on store
    num_k = pl.cdiv(K, TK)
    k_rem = K % TK if num_k > 1 else 0  # static: ragged final K block needs masking

    # Wrapper-side layout plumbing (no full-activation pad / copy).
    x2d = last_hidden_state.reshape(M, K)        # logits.view(B*S, -1)
    w = weight
    b2d = bias.reshape(1, N)
    if N_pad != N:
        w = jnp.pad(w, ((0, 0), (0, N_pad - N)))
        b2d = jnp.pad(b2d, ((0, 0), (0, N_pad - N)))

    def kernel(x_ref, w_ref, b_ref, o_ref, acc_ref):
        k = pl.program_id(1)

        @pl.when(k == 0)
        def _init():
            acc_ref[...] = jnp.zeros_like(acc_ref)

        x_blk = x_ref[...]
        if k_rem:
            # Ragged final K block: zero the out-of-range columns so garbage
            # lanes never pollute the accumulator (the garbage rows of w are
            # multiplied by these zeros).
            nk = pl.num_programs(1)
            col = jax.lax.broadcasted_iota(jnp.int32, x_blk.shape, 1)
            limit = jnp.where(k == nk - 1, k_rem, x_blk.shape[1])
            x_blk = jnp.where(col < limit, x_blk, jnp.zeros_like(x_blk))

        acc_ref[...] += jnp.dot(x_blk, w_ref[...],
                                preferred_element_type=jnp.float32)

        @pl.when(k == pl.num_programs(1) - 1)
        def _finalize():
            o_ref[...] = (acc_ref[...]
                          + b_ref[...].astype(jnp.float32)).astype(o_ref.dtype)

    cost = pl.CostEstimate(
        flops=2 * M * K * N_pad,
        transcendentals=0,
        bytes_accessed=(M * K * in_bytes + K * N_pad * in_bytes
                        + N_pad * in_bytes + M * N_pad * out_bytes),
    )

    out = pl.pallas_call(
        kernel,
        out_shape=jax.ShapeDtypeStruct((M, N_pad), out_dtype),
        grid=(num_m, num_k),
        in_specs=[
            pl.BlockSpec((TM, TK), lambda i, k: (i, k)),      # x tiles, pipelined
            pl.BlockSpec((TK, N_pad), lambda i, k: (k, 0)),   # weight (resident if num_k==1)
            pl.BlockSpec((1, N_pad), lambda i, k: (0, 0)),    # bias, resident
        ],
        out_specs=pl.BlockSpec((TM, N_pad), lambda i, k: (i, 0)),
        scratch_shapes=[pltpu.VMEM((TM, N_pad), jnp.float32)],
        compiler_params=pltpu.CompilerParams(
            dimension_semantics=("parallel", "arbitrary"),
            vmem_limit_bytes=vmem_limit,
        ),
        cost_estimate=cost,
    )(x2d, w, b2d)

    if N_pad != N:
        out = out[:, :N]  # lane slice; fuses into the consumer under jit
    return out            # shape (B*S, out_dim)


if __name__ == "__main__":
    # Small shapes consistent with the module's forward:
    #   batch=2, seq=8, in_dim=32 (hidden size of pt_model), out_dim=16 (num labels)
    B, S, in_dim, out_dim = 2, 8, 32, 16

    key = jax.random.PRNGKey(0)
    k_h, k_w, k_b = jax.random.split(key, 3)

    # Simulated pt_model(...)["last_hidden_state"]
    last_hidden_state = jax.random.normal(k_h, (B, S, in_dim), dtype=jnp.float32)

    # nn.Linear(in_dim, out_dim) parameters, stored transposed: (in_dim, out_dim)
    weight = jax.random.normal(k_w, (in_dim, out_dim), dtype=jnp.float32) * 0.02
    bias = jax.random.normal(k_b, (out_dim,), dtype=jnp.float32) * 0.02

    ref = last_hidden_state.reshape(B * S, in_dim) @ weight + bias

    # f32 path (strict check); M=16 -> TM=8 -> 2 M tiles (exercises pipelining /
    # megacore sharding path).
    out = enlabeler_head(last_hidden_state, weight, bias)
    out = jax.block_until_ready(out)
    assert out.shape == (B * S, out_dim)
    assert jnp.allclose(out, ref, atol=1e-5, rtol=1e-5)

    # bf16 activations + weights (halves HBM traffic; f32 MXU accumulation)
    out_bf16 = enlabeler_head(last_hidden_state.astype(jnp.bfloat16),
                              weight.astype(jnp.bfloat16),
                              bias.astype(jnp.bfloat16))
    out_bf16 = jax.block_until_ready(out_bf16)
    assert out_bf16.shape == (B * S, out_dim)
    assert jnp.allclose(out_bf16.astype(jnp.float32), ref, atol=5e-2, rtol=5e-2)

    # f32 inputs, bf16 output (keeps f32 accumulation, shrinks the padded write)
    out_mixed = enlabeler_head(last_hidden_state, weight, bias,
                               out_dtype=jnp.bfloat16)
    out_mixed = jax.block_until_ready(out_mixed)
    assert out_mixed.dtype == jnp.bfloat16
    assert jnp.allclose(out_mixed.astype(jnp.float32), ref, atol=5e-2, rtol=5e-2)

    print("KERNEL_OK")
</pallas_src>

<mosaic_0001>
module attributes {stable_mosaic.version = 11 : i64} {
  func.func @kernel(%arg0: i32, %arg1: i32, %arg2: memref<8x32xf32, #tpu.memory_space<vmem>>, %arg3: memref<32x128xf32, #tpu.memory_space<vmem>>, %arg4: memref<1x128xf32, #tpu.memory_space<vmem>>, %arg5: memref<8x128xf32, #tpu.memory_space<vmem>>, %arg6: memref<8x128xf32, #tpu.memory_space<vmem>>) attributes {dimension_semantics = [#tpu.dimension_semantics<parallel>, #tpu.dimension_semantics<arbitrary>], iteration_bounds = array<i64: 2, 1>, scalar_prefetch = 0 : i64, scratch_operands = 1 : i64, tpu.core_type = #tpu.core_type<tc>, window_params = [{transform_indices = @transform_0, window_bounds = array<i64: 8, 32>}, {transform_indices = @transform_1, window_bounds = array<i64: 32, 128>}, {pipeline_mode = #tpu.pipeline_mode<synchronous>, transform_indices = @transform_2, window_bounds = array<i64: 1, 128>}, {transform_indices = @transform_3, window_bounds = array<i64: 8, 128>}]} {
    %c0_i32 = arith.constant 0 : i32
    %0 = arith.cmpi eq, %arg1, %c0_i32 : i32
    %1 = arith.extui %0 : i1 to i32
    %c0_i32_0 = arith.constant 0 : i32
    %2 = arith.cmpi ne, %1, %c0_i32_0 : i32
    scf.if %2 {
      %cst_10 = arith.constant 0.000000e+00 : f32
      %12 = vector.broadcast %cst_10 : f32 to vector<8x128xf32>
      %c0_11 = arith.constant 0 : index
      %c0_12 = arith.constant 0 : index
      %13 = vector.load %arg6[%c0_11, %c0_12] : memref<8x128xf32, #tpu.memory_space<vmem>>, vector<8x128xf32>
      tpu.vector_store %arg6[%c0_11, %c0_12], %12 {strides = array<i32>} : memref<8x128xf32, #tpu.memory_space<vmem>>, vector<8x128xf32>,
    } else {
    }
    %c0 = arith.constant 0 : index
    %c0_1 = arith.constant 0 : index
    %3 = vector.load %arg2[%c0, %c0_1] : memref<8x32xf32, #tpu.memory_space<vmem>>, vector<8x32xf32>
    %c0_2 = arith.constant 0 : index
    %c0_3 = arith.constant 0 : index
    %4 = vector.load %arg6[%c0_2, %c0_3] : memref<8x128xf32, #tpu.memory_space<vmem>>, vector<8x128xf32>
    %c0_4 = arith.constant 0 : index
    %c0_5 = arith.constant 0 : index
    %5 = vector.load %arg3[%c0_4, %c0_5] : memref<32x128xf32, #tpu.memory_space<vmem>>, vector<32x128xf32>
    %cst = arith.constant dense<0.000000e+00> : vector<8x128xf32>
    %6 = tpu.matmul %3, %5, %cst {dimension_numbers = #tpu.dot_dimension_numbers<[1], [0], [0], [1], [0, 0, 1, 1], [], []>} : vector<8x32xf32>, vector<32x128xf32>, vector<8x128xf32> -> vector<8x128xf32>
    %7 = arith.addf %4, %6 : vector<8x128xf32>
    %c0_6 = arith.constant 0 : index
    %c0_7 = arith.constant 0 : index
    %8 = vector.load %arg6[%c0_6, %c0_7] : memref<8x128xf32, #tpu.memory_space<vmem>>, vector<8x128xf32>
    tpu.vector_store %arg6[%c0_6, %c0_7], %7 {strides = array<i32>} : memref<8x128xf32, #tpu.memory_space<vmem>>, vector<8x128xf32>,
    %c0_i32_8 = arith.constant 0 : i32
    %9 = arith.cmpi eq, %arg1, %c0_i32_8 : i32
    %10 = arith.extui %9 : i1 to i32
    %c0_i32_9 = arith.constant 0 : i32
    %11 = arith.cmpi ne, %10, %c0_i32_9 : i32
    scf.if %11 {
      %c0_10 = arith.constant 0 : index
      %c0_11 = arith.constant 0 : index
      %12 = vector.load %arg6[%c0_10, %c0_11] : memref<8x128xf32, #tpu.memory_space<vmem>>, vector<8x128xf32>
      %c0_12 = arith.constant 0 : index
      %c0_13 = arith.constant 0 : index
      %13 = vector.load %arg4[%c0_12, %c0_13] : memref<1x128xf32, #tpu.memory_space<vmem>>, vector<1x128xf32>
      %14 = vector.broadcast %13 : vector<1x128xf32> to vector<8x128xf32>
      %15 = arith.addf %12, %14 : vector<8x128xf32>
      %c0_14 = arith.constant 0 : index
      %c0_15 = arith.constant 0 : index
      %16 = vector.load %arg5[%c0_14, %c0_15] : memref<8x128xf32, #tpu.memory_space<vmem>>, vector<8x128xf32>
      tpu.vector_store %arg5[%c0_14, %c0_15], %15 {strides = array<i32>} : memref<8x128xf32, #tpu.memory_space<vmem>>, vector<8x128xf32>,
    } else {
    }
    return
  }
  func.func @transform_0(%arg0: i32, %arg1: i32) -> (i32, i32) {
    %c0_i32 = arith.constant 0 : i32
    return %arg0, %arg1 : i32, i32
  }
  func.func @transform_1(%arg0: i32, %arg1: i32) -> (i32, i32) {
    %c0_i32 = arith.constant 0 : i32
    %c0_i32_0 = arith.constant 0 : i32
    return %arg1, %c0_i32 : i32, i32
  }
  func.func @transform_2(%arg0: i32, %arg1: i32) -> (i32, i32) {
    %c0_i32 = arith.constant 0 : i32
    %c0_i32_0 = arith.constant 0 : i32
    %c0_i32_1 = arith.constant 0 : i32
    return %c0_i32, %c0_i32_0 : i32, i32
  }
  func.func @transform_3(%arg0: i32, %arg1: i32) -> (i32, i32) {
    %c0_i32 = arith.constant 0 : i32
    %c0_i32_0 = arith.constant 0 : i32
    return %arg0, %c0_i32 : i32, i32
  }
}

</mosaic_0001>

<llo_original>
// kernel: tpu_custom_call.1
$region0: #{tpu_custom_call.1}
  #allocation0 [shape = 'u32[]', space=smem, size = 0x4, offset = 0x4, fixed_abs, tag = 'smem constant byte address 0x4 - core index']
  #allocation1 [shape = 'u32[144,128]{1,0:T(1,128)}', space=vmem, size = 0x12000, scoped, tag = 'internal scratch']
  #allocation2 [shape = 'f32[8,128]{1,0:T(8,128)}', space=vmem, size = 0x1000, scoped, tag = 'scratch operand']
  %s0 = inlined_call_operand.hbm [shape: f32[16,32], index: 0, kind: input, shape index: {}]
  %s1 = inlined_call_operand.hbm [shape: f32[32,128], index: 1, kind: input, shape index: {}]
  %s2 = inlined_call_operand.vmem [shape: f32[1,128], index: 2, kind: input, shape index: {}]
  %s3 = inlined_call_operand.hbm [shape: f32[16,128], index: 3, kind: output, shape index: {}]
  %s4 = sld [smem:[#allocation0]]
  $region61: #{tpu_custom_call.1} parent=0
    _
  %s6 = ssub.s32 1, %s4
  %s7 = scalar_select 0, %s6, %s4
  $region1: #{tpu_custom_call.1} parent=0
    #allocation3 [shape = 'u8[8192]{0}', space=vmem, size = 0x2000, scoped, tag = 'input window, operand 0']
    #allocation4 [shape = 's32[2]{0}', space=sflag, size = 0x8, scoped, tag = 'scoped memory for tpu_custom_call.1']
    #allocation5 [shape = 's32[2]{0}', space=sflag, size = 0x8, scoped, tag = 'scoped memory for tpu_custom_call.1']
    #allocation6 [shape = 'u8[16384]{0}', space=vmem, size = 0x4000, scoped, tag = 'input window, operand 1, single buffered']
    #allocation7 [shape = 's32[1]{0}', space=sflag, size = 0x4, scoped, tag = 'scoped memory for tpu_custom_call.1']
    #allocation8 [shape = 'u8[8192]{0}', space=vmem, size = 0x2000, scoped, tag = 'output window, operand 0']
    %8 = vsyncpa [#allocation4], 0
    %s9 = scalar_lea.sflag [#allocation4], 1
    %10 = vsyncpa %s9, 0
    %11 = vsyncpa [#allocation7], 0
    %12 = vsyncpa [#allocation5], 0
    %s13 = scalar_lea.sflag [#allocation5], 1
    %14 = vsyncpa %s13, 0
    loop: start=0, step=1, limit=4
    $region2: #{tpu_custom_call.1} parent=1 // loop_pre_header
      _
    $region3: #{tpu_custom_call.1} parent=1 // loop_header
      %s16 = sphi 0, %s20
      %p17 = scmp.ge.s32.totalorder %s16, 4
      %s23 = sphi 0, %s35
      %s24 = sphi 0, %s31
      %s25 = sphi 0, %s23
      %s26 = sphi 0, %s24
      %s27 = sphi 0, %s25
      %s28 = sphi 0, %s26
      %s40 = sphi 0, %s42
      %s43 = sphi 0, %s40
      %s44 = sphi 0, %s43
      %s60 = sphi 0, %s44
      %s66 = sphi 0, %s68
      %s69 = sphi 0, %s66
      %s70 = sphi 0, %s69
      %s86 = sphi 0, %s70
      %s90 = sphi 0, %s90
      %s92 = sphi 0, %s90
      %s93 = sphi 0, %s92
      %s107 = sphi 0, %s93
      %s113 = sphi 0, %s115
      %s116 = sphi 0, %s113
      %s117 = sphi 0, %s116
      %s133 = sphi 0, %s117
    $region4: #{tpu_custom_call.1} parent=1 // loop_header_branch
      %19 = sbr.rel (%p17) target = $region8
    $region5: #{tpu_custom_call.1} parent=1 // loop_body
      %s21 = ssub.s32 %s16, 1
      %s22 = ssub.s32 %s16, 2
      %s29 = sadd.s32 1, %s24
      %p30 = scmp.ge.s32.totalorder %s29, 1
      %s31 = scalar_select %p30, 0, %s29
      %s32 = sadd.s32 1, %s23
      %s33 = scalar_select %p30, %s32, %s23
      %p34 = scmp.ge.s32.totalorder %s33, 2
      %s35 = scalar_select %p34, 0, %s33
      %s36 = ssub.s32 %s23, %s35
      %s37 = ssub.s32 %s24, %s31
      %s38 = sor.u32 %s36, %s37
      %p39 = scmp.eq.s32.totalorder %s38, 0
      %s41 = sadd.s32 %s40, 1
      %s42 = scalar_select %p39, %s40, %s41
      %p45 = pneg %p39
      %p46 = scmp.eq.s32.totalorder %s16, 1
      %p47 = por %p45, %p46
      %p48 = scmp.ne.s32.totalorder %s40, %s43
      %p49 = scmp.eq.s32.totalorder %s16, 0
      %p50 = por %p48, %p49
      %p51 = scmp.ne.s32.totalorder %s40, %s43
      %p52 = scmp.eq.s32.totalorder %s21, 1
      %p53 = por %p51, %p52
      %p54 = scmp.ne.s32.totalorder %s43, %s44
      %p55 = scmp.eq.s32.totalorder %s21, 0
      %p56 = por %p54, %p55
      %p57 = scmp.ne.s32.totalorder %s43, %s44
      %p58 = scmp.eq.s32.totalorder %s22, 1
      %p59 = por %p57, %p58
      %p61 = scmp.ne.s32.totalorder %s44, %s60
      %p62 = scmp.eq.s32.totalorder %s22, 0
      %p63 = por %p61, %p62
      %s64 = ssub.s32 %s24, %s31
      %p65 = scmp.eq.s32.totalorder %s64, 0
      %s67 = sadd.s32 %s66, 1
      %s68 = scalar_select %p65, %s66, %s67
      %p71 = pneg %p65
      %p72 = scmp.eq.s32.totalorder %s16, 1
      %p73 = por %p71, %p72
      %p74 = scmp.ne.s32.totalorder %s66, %s69
      %p75 = scmp.eq.s32.totalorder %s16, 0
      %p76 = por %p74, %p75
      %p77 = scmp.ne.s32.totalorder %s66, %s69
      %p78 = scmp.eq.s32.totalorder %s21, 1
      %p79 = por %p77, %p78
      %p80 = scmp.ne.s32.totalorder %s69, %s70
      %p81 = scmp.eq.s32.totalorder %s21, 0
      %p82 = por %p80, %p81
      %p83 = scmp.ne.s32.totalorder %s69, %s70
      %p84 = scmp.eq.s32.totalorder %s22, 1
      %p85 = por %p83, %p84
      %p87 = scmp.ne.s32.totalorder %s70, %s86
      %p88 = scmp.eq.s32.totalorder %s22, 0
      %p89 = por %p87, %p88
      %s91 = sadd.s32 %s90, 1
      %p94 = scmp.eq.s32.totalorder %s16, 1
      %p95 = scmp.ne.s32.totalorder %s90, %s92
      %p96 = scmp.eq.s32.totalorder %s16, 0
      %p97 = por %p95, %p96
      %p98 = scmp.ne.s32.totalorder %s90, %s92
      %p99 = scmp.eq.s32.totalorder %s21, 1
      %p100 = por %p98, %p99
      %p101 = scmp.ne.s32.totalorder %s92, %s93
      %p102 = scmp.eq.s32.totalorder %s21, 0
      %p103 = por %p101, %p102
      %p104 = scmp.ne.s32.totalorder %s92, %s93
      %p105 = scmp.eq.s32.totalorder %s22, 1
      %p106 = por %p104, %p105
      %p108 = scmp.ne.s32.totalorder %s93, %s107
      %p109 = scmp.eq.s32.totalorder %s22, 0
      %p110 = por %p108, %p109
      %s111 = ssub.s32 %s23, %s35
      %p112 = scmp.eq.s32.totalorder %s111, 0
      %s114 = sadd.s32 %s113, 1
      %s115 = scalar_select %p112, %s113, %s114
      %p118 = pneg %p112
      %p119 = scmp.eq.s32.totalorder %s16, 1
      %p120 = por %p118, %p119
      %p121 = scmp.ne.s32.totalorder %s113, %s116
      %p122 = scmp.eq.s32.totalorder %s16, 0
      %p123 = por %p121, %p122
      %p124 = scmp.ne.s32.totalorder %s113, %s116
      %p125 = scmp.eq.s32.totalorder %s21, 1
      %p126 = por %p124, %p125
      %p127 = scmp.ne.s32.totalorder %s116, %s117
      %p128 = scmp.eq.s32.totalorder %s21, 0
      %p129 = por %p127, %p128
      %p130 = scmp.ne.s32.totalorder %s116, %s117
      %p131 = scmp.eq.s32.totalorder %s22, 1
      %p132 = por %p130, %p131
      %p134 = scmp.ne.s32.totalorder %s117, %s133
      %p135 = scmp.eq.s32.totalorder %s22, 0
      %p136 = por %p134, %p135
      %p137 = scmp.le.s32.totalorder 1, %s16
      %p138 = scmp.lt.s32.totalorder %s16, 3
      %p139 = pnand %p137, %p138
      %p140 = pneg %p139
      // Predicated region
      $region9: #{tpu_custom_call.1} parent=5 // pred_check
        _
      $region10: #{tpu_custom_call.1} parent=5 // pred_check_branch
        %142 = sbr.rel (%p139) target = $region12
      $region11: #{tpu_custom_call.1} parent=5 // pred_region
        %s143 = ssub.s32 %s16, 1
        // Predicated region
        $region13: #{tpu_custom_call.1} parent=11 // pred_check
          %p144 = pneg %p82
        $region14: #{tpu_custom_call.1} parent=11 // pred_check_branch
          %146 = sbr.rel (%p144) target = $region16
        $region15: #{tpu_custom_call.1} parent=11 // pred_region
          %s147 = smul.u32 4, %s26
          %s149 = ssub.s32 512, 512
          %150 = vsyncadd [#allocation7], %s149
          %s151 = smul.addr %s147, 128
          %s152 = scalar_lea.hbm %s1, %s151
          %s153 = sshll.u32 [#allocation6], 4
          %s154 = int_to_ptr.vmem [resolvable:$true] %s153
          %159 = dma.hbm_to_vmem [thread:$0]  %s152, 512, %s154, [#allocation7], 128, 128, 8
        $region16: #{tpu_custom_call.1} parent=11 // pred_fallthru
          _
        // Predicated region
        $region17: #{tpu_custom_call.1} parent=11 // pred_check
          %p160 = pneg %p103
        $region18: #{tpu_custom_call.1} parent=11 // pred_check_branch
          %162 = sbr.rel (%p160) target = $region20
        $region19: #{tpu_custom_call.1} parent=11 // pred_region
          _
        $region20: #{tpu_custom_call.1} parent=11 // pred_fallthru
          _
      $region12: #{tpu_custom_call.1} parent=5 // pred_fallthru
        _
      %p163 = scmp.lt.s32.totalorder %s16, 2
      // Predicated region
      $region21: #{tpu_custom_call.1} parent=5 // pred_check
        %p164 = pneg %p163
      $region22: #{tpu_custom_call.1} parent=5 // pred_check_branch
        %166 = sbr.rel (%p164) target = $region24
      $region23: #{tpu_custom_call.1} parent=5 // pred_region
        // Predicated region
        $region25: #{tpu_custom_call.1} parent=23 // pred_check
          %p167 = pneg %p50
        $region26: #{tpu_custom_call.1} parent=23 // pred_check_branch
          %169 = sbr.rel (%p167) target = $region28
        $region27: #{tpu_custom_call.1} parent=23 // pred_region
          %s170 = sand.u32 %s40, 1
          %s171 = scalar_lea.sflag [#allocation4], %s170
          %s172 = sand.u32 %s40, 1
          %s173 = smul.addr %s172, 8
          %s174 = scalar_lea.vmem [#allocation3], %s173
          %s176 = ssub.s32 128, 128
          %177 = vsyncadd %s171, %s176
          %s178 = sadd.s32 %s24, %s23
          %s179 = smul.addr %s178, 128
          %s180 = scalar_lea.hbm %s0, %s179
          %s182 = sshll.u32 %s174, 4
          %s183 = int_to_ptr.vmem [resolvable:$true] %s182
          %185 = dma.hbm_to_vmem [thread:$0]  %s180, 128, %s183, %s171
        $region28: #{tpu_custom_call.1} parent=23 // pred_fallthru
          _
      $region24: #{tpu_custom_call.1} parent=5 // pred_fallthru
        _
      %p186 = scmp.le.s32.totalorder 1, %s16
      %p187 = scmp.lt.s32.totalorder %s16, 3
      %p188 = pnand %p186, %p187
      %p189 = pneg %p188
      // Predicated region
      $region29: #{tpu_custom_call.1} parent=5 // pred_check
        _
      $region30: #{tpu_custom_call.1} parent=5 // pred_check_branch
        %191 = sbr.rel (%p188) target = $region32
      $region31: #{tpu_custom_call.1} parent=5 // pred_region
        %s192 = ssub.s32 %s16, 1
        %s193 = sand.u32 %s43, 1
        %s194 = scalar_lea.sflag [#allocation4], %s193
        %s195 = sand.u32 %s43, 1
        %s196 = smul.addr %s195, 8
        %s197 = scalar_lea.vmem [#allocation3], %s196
        // Predicated region
        $region33: #{tpu_custom_call.1} parent=31 // pred_check
          %p198 = pneg %p56
        $region34: #{tpu_custom_call.1} parent=31 // pred_check_branch
          %200 = sbr.rel (%p198) target = $region36
        $region35: #{tpu_custom_call.1} parent=31 // pred_region
          %201 = dma.done %s194, 128
        $region36: #{tpu_custom_call.1} parent=31 // pred_fallthru
          _
        // Predicated region
        $region37: #{tpu_custom_call.1} parent=31 // pred_check
          %p202 = pneg %p82
        $region38: #{tpu_custom_call.1} parent=31 // pred_check_branch
          %204 = sbr.rel (%p202) target = $region40
        $region39: #{tpu_custom_call.1} parent=31 // pred_region
          %205 = dma.done [#allocation7], 512
        $region40: #{tpu_custom_call.1} parent=31 // pred_fallthru
          _
        %s206 = sand.u32 %s43, 1
        %s207 = scalar_lea.sflag [#allocation4], %s206
        %s208 = sand.u32 %s43, 1
        %s209 = smul.addr %s208, 8
        %s210 = scalar_lea.vmem [#allocation3], %s209
        %p211 = pneg %p56
        %p212 = pneg %p53
        %p213 = pneg %p82
        %p214 = pneg %p79
        %p215 = pneg %p103
        %p216 = pneg %p100
        %p217 = pneg %p129
        %p218 = pneg %p126
        %s219 = sand.u32 %s116, 1
        %s220 = scalar_lea.sflag [#allocation5], %s219
        %s221 = sand.u32 %s116, 1
        %s222 = smul.addr %s221, 8
        %s223 = scalar_lea.vmem [#allocation8], %s222
        %s224 = smul.u32 4, %s26
        %p225 = scmp.eq.s32.totalorder %s26, 0
        // Predicated region
        $region41: #{tpu_custom_call.1} parent=31 // pred_check
          %p226 = pneg %p225
        $region42: #{tpu_custom_call.1} parent=31 // pred_check_branch
          %228 = sbr.rel (%p226) target = $region44
        $region43: #{tpu_custom_call.1} parent=31 // pred_region
          %229 = vst [vmem:[#allocation2] sm:$0xff] 0.0
        $region44: #{tpu_custom_call.1} parent=31 // pred_fallthru
          _
        %v230 = vld [vmem:[%s197] sm:$0xff]
        %v231 = vld [vmem:[#allocation2] sm:$0xff]
        %v232 = vld [vmem:[#allocation6] sm:$0xff]
        %v233 = vld [vmem:[#allocation6 + $0x8] sm:$0xff]
        %v234 = vld [vmem:[#allocation6 + $0x10] sm:$0xff]
        %v235 = vld [vmem:[#allocation6 + $0x18] sm:$0xff]
        %vm236 = vcmask 261120
        %v238 = vsel %vm236, %v230, 0
        %240 = vmatprep.subr.mxu0 0.0
        %241 = vmatpush1.msra.mxu0 %v232
        %242 = vmatprep.subr.mxu0 0.0
        %243 = vmatpush1.msra.mxu0 %v233
        %244 = vmatprep.subr.mxu0 0.0
        %245 = vmatpush1.msra.mxu0 %v234
        %246 = vmatprep.subr.mxu0 0.0
        %247 = vmatpush1.msra.mxu0 %v235
        %248 = vmatprep.subr.mxu0 0.0
        %249 = vmatpush1.msra.mxu0 0.0
        %250 = vmatprep.subr.mxu0 0.0
        %251 = vmatpush1.msra.mxu0 0.0
        %252 = vmatprep.subr.mxu0 0.0
        %253 = vmatpush1.msra.mxu0 0.0
        %254 = vmatprep.subr.mxu0 0.0
        %255 = vmatpush1.msra.mxu0 0.0
        %256 = vmatprep.subr.mxu0 0.0
        %257 = vmatpush1.msra.mxu0 0.0
        %258 = vmatprep.subr.mxu0 0.0
        %259 = vmatpush1.msra.mxu0 0.0
        %260 = vmatprep.subr.mxu0 0.0
        %261 = vmatpush1.msra.mxu0 0.0
        %262 = vmatprep.subr.mxu0 0.0
        %263 = vmatpush1.msra.mxu0 0.0
        %264 = vmatprep.subr.mxu0 0.0
        %265 = vmatpush1.msra.mxu0 0.0
        %266 = vmatprep.subr.mxu0 0.0
        %267 = vmatpush1.msra.mxu0 0.0
        %268 = vmatprep.subr.mxu0 0.0
        %269 = vmatpush1.msra.mxu0 0.0
        %270 = vmatprep.subr.mxu0 0.0
        %271 = vmatpush1.msra.mxu0 0.0
        %272 = vmatprep.subr.mxu0 0.0
        %273 = vmatpush1.msra.mxu0 0.0
        %274 = vmatprep.subr.mxu0 0.0
        %275 = vmatpush1.msra.mxu0 0.0
        %276 = vmatprep.subr.mxu0 0.0
        %277 = vmatpush1.msra.mxu0 0.0
        %278 = vmatprep.subr.mxu0 0.0
        %279 = vmatpush1.msra.mxu0 0.0
        %280 = vmatprep.subr.mxu0 0.0
        %281 = vmatpush1.msra.mxu0 0.0
        %282 = vmatprep.subr.mxu0 0.0
        %283 = vmatpush1.msra.mxu0 0.0
        %284 = vmatprep.subr.mxu0 0.0
        %285 = vmatpush1.msra.mxu0 0.0
        %286 = vmatprep.subr.mxu0 0.0
        %287 = vmatpush1.msra.mxu0 0.0
        %288 = vmatprep.subr.mxu0 0.0
        %289 = vmatpush1.msra.mxu0 0.0
        %290 = vmatprep.subr.mxu0 0.0
        %291 = vmatpush1.msra.mxu0 0.0
        %292 = vmatprep.subr.mxu0 0.0
        %293 = vmatpush1.msra.mxu0 0.0
        %294 = vmatprep.subr.mxu0 0.0
        %295 = vmatpush1.msra.mxu0 0.0
        %296 = vmatprep.subr.mxu0 0.0
        %297 = vmatpush1.msra.mxu0 0.0
        %298 = vmatprep.subr.mxu0 0.0
        %299 = vmatpush1.msra.mxu0 0.0
        %300 = vmatprep.subr.mxu0 0.0
        %301 = vmatpush1.msra.mxu0 0.0
        %302 = vmatprep.subr.mxu0 0.0
        %303 = vmatpush1.msra.mxu0 0.0
        %304 = vmatprep.mubr.f32.mxu0 0.0
        %305 = vmatmul.mubr.f32.gmra.mrb[0].mxu0 %v238
        %v306 = vpop.f32.mrb[0].mxu0
        %v307 = vadd.f32 0.0, %v306
        %v308 = vpop.f32.mrb[0].mxu0
        %309 = vdwg.mxu0
        %v310 = vadd.f32 %v231, %v307
        %311 = vst [vmem:[#allocation2] sm:$0xff] %v310
        // Predicated region
        $region45: #{tpu_custom_call.1} parent=31 // pred_check
          %p312 = pneg %p225
        $region46: #{tpu_custom_call.1} parent=31 // pred_check_branch
          %314 = sbr.rel (%p312) target = $region48
        $region47: #{tpu_custom_call.1} parent=31 // pred_region
          %v315 = vld [vmem:[#allocation2] sm:$0xff]
          %v316 = vld [vmem:[%s2] sm:$0x1]
          %v318 = vlaneseq
          %v319 = vshrl.u32 %v318, 7
          %v320 = vsub.s32 0, %v319
          %v321 = vrot.slane %v316, %v320
          %v323 = vadd.f32 %v315, %v321
          %324 = vst [vmem:[%s223] sm:$0xff] %v323
        $region48: #{tpu_custom_call.1} parent=31 // pred_fallthru
          _
        %s325 = sand.u32 %s116, 1
        %s326 = scalar_lea.sflag [#allocation5], %s325
        %s327 = sand.u32 %s116, 1
        %s328 = smul.addr %s327, 8
        %s329 = scalar_lea.vmem [#allocation8], %s328
        // Predicated region
        $region49: #{tpu_custom_call.1} parent=31 // pred_check
          %p330 = pneg %p126
        $region50: #{tpu_custom_call.1} parent=31 // pred_check_branch
          %332 = sbr.rel (%p330) target = $region52
        $region51: #{tpu_custom_call.1} parent=31 // pred_region
          %s334 = ssub.s32 128, 128
          %335 = vsyncadd %s326, %s334
          %s336 = smul.addr %s25, 128
          %s337 = scalar_lea.hbm %s3, %s336
          %s339 = sshll.u32 %s329, 4
          %s340 = int_to_ptr.vmem [resolvable:$true] %s339
          %342 = dma.vmem_to_hbm [thread:$0]  %s340, 128, %s337, %s326
        $region52: #{tpu_custom_call.1} parent=31 // pred_fallthru
          _
      $region32: #{tpu_custom_call.1} parent=5 // pred_fallthru
        _
      %p343 = scmp.le.s32.totalorder 2, %s16
      // Predicated region
      $region53: #{tpu_custom_call.1} parent=5 // pred_check
        %p344 = pneg %p343
      $region54: #{tpu_custom_call.1} parent=5 // pred_check_branch
        %346 = sbr.rel (%p344) target = $region56
      $region55: #{tpu_custom_call.1} parent=5 // pred_region
        %s347 = ssub.s32 %s16, 2
        // Predicated region
        $region57: #{tpu_custom_call.1} parent=55 // pred_check
          %p348 = pneg %p132
        $region58: #{tpu_custom_call.1} parent=55 // pred_check_branch
          %350 = sbr.rel (%p348) target = $region60
        $region59: #{tpu_custom_call.1} parent=55 // pred_region
          %s351 = sand.u32 %s117, 1
          %s352 = scalar_lea.sflag [#allocation5], %s351
          %s353 = sand.u32 %s117, 1
          %s354 = smul.addr %s353, 8
          %s355 = scalar_lea.vmem [#allocation8], %s354
          %356 = dma.done %s352, 128
        $region60: #{tpu_custom_call.1} parent=55 // pred_fallthru
          _
      $region56: #{tpu_custom_call.1} parent=5 // pred_fallthru
        _
    $region6: #{tpu_custom_call.1} parent=1 // loop_footer
      %s20 = sadd.s32 1, %s16
    $region7: #{tpu_custom_call.1} parent=1 // loop_footer_branch
      %15 = sbr.rel target = $region3
    $region8: #{tpu_custom_call.1} parent=1 // loop_exit
      _
    %357 = vsyncpa [#allocation4], 1
    %s358 = scalar_lea.sflag [#allocation4], 1
    %359 = vsyncpa %s358, 1
    %360 = vsyncpa [#allocation7], 1
    %361 = vsyncpa [#allocation5], 1
    %s362 = scalar_lea.sflag [#allocation5], 1
    %363 = vsyncpa %s362, 1

</llo_original>
